<compile_context>
chip_gen: v5e
topology: v5e:2x2
jax: 0.10.0
libtpu: 0.0.40
codegen_flags: <defaults>
</compile_context>

<pallas_src>
import functools

import jax
import jax.numpy as jnp
from jax.experimental import pallas as pl
from jax.experimental.pallas import tpu as pltpu


def _round_up(x, m):
    return (x + m - 1) // m * m


def _mfq_kernel(x_ref, w_rep_ref, b_rep_ref, w1s_ref, w1r_ref, b1_ref,
                w2_ref, b2_ref, out_ref, *, rep_dim, compute_dtype):
    # One activation tile: [obs | actions_mean | agent_ids]; cast in-kernel (hidden under DMA).
    x = x_ref[...].astype(compute_dtype)

    # --- representation: ReLU(obs @ W_rep + b_rep). W_rep is zero-padded over the am/ids rows,
    #     so the merged dot is exactly obs @ W_rep; f32 accumulation on the MXU. ---
    state = jnp.dot(x, w_rep_ref[...], preferred_element_type=jnp.float32)
    state = jnp.maximum(state + b_rep_ref[...], 0.0)

    # --- BasicQhead layer 1: concat([state, am, ids]) @ W1 rewritten as two accumulating dots
    #     (state part + merged zero-padded am/ids part) -> no cross-lane concat / relayout. ---
    h = jnp.dot(state.astype(compute_dtype), w1s_ref[...], preferred_element_type=jnp.float32)
    h = h + jnp.dot(x, w1r_ref[...], preferred_element_type=jnp.float32)
    h = jnp.maximum(h + b1_ref[...], 0.0)

    # --- BasicQhead layer 2 ---
    q = jnp.dot(h.astype(compute_dtype), w2_ref[...], preferred_element_type=jnp.float32)
    q = q + b2_ref[...]

    # Packed, lane-dense output slab [state | q]: single output DMA stream per tile.
    out_ref[:, :rep_dim] = state.astype(out_ref.dtype)
    out_ref[:, rep_dim:] = q.astype(out_ref.dtype)


def mfq_forward(observation, actions_mean, agent_ids, params,
                compute_dtype=jnp.bfloat16, out_dtype=None, tile_rows=2048):
    """Fused MFQnetwork forward. Returns ({'state': state}, argmax_action, evalQ)."""
    B, A, obs_dim = observation.shape
    n_actions = actions_mean.shape[-1]
    n_agents = agent_ids.shape[-1]
    rep_dim = params["w_rep"].shape[1]
    hidden = params["w1"].shape[1]
    N = B * A
    d_in = obs_dim + n_actions + n_agents
    d_out = rep_dim + n_actions
    if out_dtype is None:
        out_dtype = compute_dtype

    # Sublane multiple: bf16 packs two rows per sublane -> 16-row multiples (8 for f32).
    sub = 8 * max(1, 4 // jnp.dtype(compute_dtype).itemsize)
    # Cap the row tile at ceil(N/2) so the "parallel" grid has >= 2 steps (v7x: 2 TensorCores).
    tm = min(int(tile_rows), _round_up(pl.cdiv(N, 2), sub))
    tm = _round_up(max(tm, sub), sub)
    n_pad = _round_up(N, tm)
    grid = (n_pad // tm,)

    # Single activation slab in its NATIVE dtype (cast happens in-kernel); one wrapper pass.
    x = jnp.concatenate(
        [observation.reshape(N, obs_dim),
         actions_mean.reshape(N, n_actions),
         agent_ids.reshape(N, n_agents)], axis=-1)
    if n_pad != N:
        x = jnp.pad(x, ((0, n_pad - N), (0, 0)))  # padded rows are discarded after the call

    # Resident weights (cast once in the wrapper - tiny). W_rep zero-padded to d_in rows; the
    # am/ids rows of W1 merged into one zero-padded (d_in, hidden) weight.
    w_rep_pad = jnp.zeros((d_in, rep_dim), compute_dtype).at[:obs_dim, :].set(
        params["w_rep"].astype(compute_dtype))
    w1 = params["w1"].astype(compute_dtype)
    w1_state = w1[:rep_dim]                                             # (rep_dim, hidden)
    w1_rest = jnp.zeros((d_in, hidden), compute_dtype).at[obs_dim:, :].set(w1[rep_dim:])
    w2 = params["w2"].astype(compute_dtype)
    b_rep = params["b_rep"].reshape(1, rep_dim).astype(jnp.float32)
    b1 = params["b1"].reshape(1, hidden).astype(jnp.float32)
    b2 = params["b2"].reshape(1, n_actions).astype(jnp.float32)

    row = pl.BlockSpec((tm, d_in), lambda i: (i, 0))                    # per-tile activations
    out_spec = pl.BlockSpec((tm, d_out), lambda i: (i, 0))              # packed per-tile output
    resident = lambda shp: pl.BlockSpec(shp, lambda i: (0, 0))          # weights stay VMEM-resident

    packed = pl.pallas_call(
        functools.partial(_mfq_kernel, rep_dim=rep_dim, compute_dtype=compute_dtype),
        grid=grid,
        out_shape=jax.ShapeDtypeStruct((n_pad, d_out), out_dtype),
        in_specs=[
            row,
            resident((d_in, rep_dim)), resident((1, rep_dim)),
            resident((rep_dim, hidden)), resident((d_in, hidden)), resident((1, hidden)),
            resident((hidden, n_actions)), resident((1, n_actions)),
        ],
        out_specs=out_spec,
        compiler_params=pltpu.CompilerParams(dimension_semantics=("parallel",)),
    )(x, w_rep_pad, b_rep, w1_state, w1_rest, b1, w2, b2)

    packed = packed[:N].reshape(B, A, d_out)
    state = packed[..., :rep_dim]
    evalQ = packed[..., rep_dim:]
    # argmax in XLA: avoids a lane-sparse (N, 1) int32 store and XLU reductions in the kernel.
    argmax_action = jnp.argmax(evalQ, axis=-1).astype(jnp.int32)
    return {"state": state}, argmax_action, evalQ


def _reference_forward(observation, actions_mean, agent_ids, params):
    state = jnp.maximum(observation @ params["w_rep"] + params["b_rep"], 0.0)
    q_in = jnp.concatenate([state, actions_mean, agent_ids], axis=-1)
    h = jnp.maximum(q_in @ params["w1"] + params["b1"], 0.0)
    q = h @ params["w2"] + params["b2"]
    return state, jnp.argmax(q, axis=-1).astype(jnp.int32), q


if __name__ == "__main__":
    # Small, module-consistent sizes.
    batch, n_agents, obs_dim = 10, 3, 16
    rep_dim, n_actions, hidden = 32, 5, 32
    q_in_dim = rep_dim + n_actions + n_agents  # BasicQhead input: state + n_actions + n_agents

    key = jax.random.PRNGKey(0)
    k_obs, k_am, k1, k2, k3, k4, k5, k6 = jax.random.split(key, 8)

    observation = jax.random.normal(k_obs, (batch, n_agents, obs_dim), dtype=jnp.float32)
    actions_mean = jax.nn.softmax(
        jax.random.normal(k_am, (batch, n_agents, n_actions), dtype=jnp.float32), axis=-1)
    agent_ids = jnp.broadcast_to(jnp.eye(n_agents, dtype=jnp.float32)[None, :, :],
                                 (batch, n_agents, n_agents))

    params = {
        "w_rep": 0.1 * jax.random.normal(k1, (obs_dim, rep_dim), dtype=jnp.float32),
        "b_rep": 0.01 * jax.random.normal(k2, (1, rep_dim), dtype=jnp.float32),
        "w1": 0.1 * jax.random.normal(k3, (q_in_dim, hidden), dtype=jnp.float32),
        "b1": 0.01 * jax.random.normal(k4, (1, hidden), dtype=jnp.float32),
        "w2": 0.1 * jax.random.normal(k5, (hidden, n_actions), dtype=jnp.float32),
        "b2": 0.01 * jax.random.normal(k6, (1, n_actions), dtype=jnp.float32),
    }

    ref_state, ref_argmax, ref_q = _reference_forward(observation, actions_mean, agent_ids, params)

    # --- f32 path with a deliberately tiny row tile: exercises a multi-step grid (N=30 ->
    #     padded to 32, grid=(4,)) and the padded final-tile handling; exact vs reference. ---
    outputs, argmax_action, evalQ = mfq_forward(
        observation, actions_mean, agent_ids, params,
        compute_dtype=jnp.float32, tile_rows=8)
    jax.block_until_ready((outputs["state"], argmax_action, evalQ))
    assert jnp.allclose(outputs["state"], ref_state, atol=1e-5), "state mismatch (f32)"
    assert jnp.allclose(evalQ, ref_q, atol=1e-5), "evalQ mismatch (f32)"
    assert jnp.array_equal(argmax_action, ref_argmax), "argmax mismatch (f32)"

    # --- default bf16 compute + bf16 packed-output path (v6e/v7x friendly): halves weight DMA
    #     and state/q writeback bytes.  argmax not asserted: bf16 can flip near-ties vs f32. ---
    outputs_bf, argmax_bf, evalQ_bf = mfq_forward(observation, actions_mean, agent_ids, params)
    jax.block_until_ready((outputs_bf["state"], argmax_bf, evalQ_bf))
    assert jnp.allclose(outputs_bf["state"].astype(jnp.float32), ref_state,
                        atol=5e-2, rtol=5e-2), "state mismatch (bf16)"
    assert jnp.allclose(evalQ_bf.astype(jnp.float32), ref_q,
                        atol=5e-2, rtol=5e-2), "evalQ mismatch (bf16)"

    print("KERNEL_OK")
</pallas_src>

<mosaic_0001>
module attributes {stable_mosaic.version = 11 : i64} {
  func.func @_mfq_kernel(%arg0: i32, %arg1: memref<8x24xf32, #tpu.memory_space<vmem>>, %arg2: memref<24x32xf32, #tpu.memory_space<vmem>>, %arg3: memref<1x32xf32, #tpu.memory_space<vmem>>, %arg4: memref<32x32xf32, #tpu.memory_space<vmem>>, %arg5: memref<24x32xf32, #tpu.memory_space<vmem>>, %arg6: memref<1x32xf32, #tpu.memory_space<vmem>>, %arg7: memref<32x5xf32, #tpu.memory_space<vmem>>, %arg8: memref<1x5xf32, #tpu.memory_space<vmem>>, %arg9: memref<8x37xf32, #tpu.memory_space<vmem>>) attributes {dimension_semantics = [#tpu.dimension_semantics<parallel>], iteration_bounds = array<i64: 4>, scalar_prefetch = 0 : i64, scratch_operands = 0 : i64, tpu.core_type = #tpu.core_type<tc>, window_params = [{transform_indices = @transform_0, window_bounds = array<i64: 8, 24>}, {pipeline_mode = #tpu.pipeline_mode<synchronous>, transform_indices = @transform_1, window_bounds = array<i64: 24, 32>}, {pipeline_mode = #tpu.pipeline_mode<synchronous>, transform_indices = @transform_2, window_bounds = array<i64: 1, 32>}, {pipeline_mode = #tpu.pipeline_mode<synchronous>, transform_indices = @transform_3, window_bounds = array<i64: 32, 32>}, {pipeline_mode = #tpu.pipeline_mode<synchronous>, transform_indices = @transform_4, window_bounds = array<i64: 24, 32>}, {pipeline_mode = #tpu.pipeline_mode<synchronous>, transform_indices = @transform_5, window_bounds = array<i64: 1, 32>}, {pipeline_mode = #tpu.pipeline_mode<synchronous>, transform_indices = @transform_6, window_bounds = array<i64: 32, 5>}, {pipeline_mode = #tpu.pipeline_mode<synchronous>, transform_indices = @transform_7, window_bounds = array<i64: 1, 5>}, {transform_indices = @transform_8, window_bounds = array<i64: 8, 37>}]} {
    %c0 = arith.constant 0 : index
    %c0_0 = arith.constant 0 : index
    %0 = vector.load %arg1[%c0, %c0_0] : memref<8x24xf32, #tpu.memory_space<vmem>>, vector<8x24xf32>
    %c0_1 = arith.constant 0 : index
    %c0_2 = arith.constant 0 : index
    %1 = vector.load %arg2[%c0_1, %c0_2] : memref<24x32xf32, #tpu.memory_space<vmem>>, vector<24x32xf32>
    %cst = arith.constant dense<0.000000e+00> : vector<8x32xf32>
    %2 = tpu.matmul %0, %1, %cst {dimension_numbers = #tpu.dot_dimension_numbers<[1], [0], [0], [1], [0, 0, 1, 1], [], []>} : vector<8x24xf32>, vector<24x32xf32>, vector<8x32xf32> -> vector<8x32xf32>
    %c0_3 = arith.constant 0 : index
    %c0_4 = arith.constant 0 : index
    %3 = vector.load %arg3[%c0_3, %c0_4] : memref<1x32xf32, #tpu.memory_space<vmem>>, vector<1x32xf32>
    %4 = vector.broadcast %3 : vector<1x32xf32> to vector<8x32xf32>
    %5 = arith.addf %2, %4 : vector<8x32xf32>
    %cst_5 = arith.constant 0.000000e+00 : f32
    %6 = vector.broadcast %cst_5 : f32 to vector<8x32xf32>
    %7 = arith.maximumf %5, %6 : vector<8x32xf32>
    %c0_6 = arith.constant 0 : index
    %c0_7 = arith.constant 0 : index
    %8 = vector.load %arg4[%c0_6, %c0_7] : memref<32x32xf32, #tpu.memory_space<vmem>>, vector<32x32xf32>
    %cst_8 = arith.constant dense<0.000000e+00> : vector<8x32xf32>
    %9 = tpu.matmul %7, %8, %cst_8 {dimension_numbers = #tpu.dot_dimension_numbers<[1], [0], [0], [1], [0, 0, 1, 1], [], []>} : vector<8x32xf32>, vector<32x32xf32>, vector<8x32xf32> -> vector<8x32xf32>
    %c0_9 = arith.constant 0 : index
    %c0_10 = arith.constant 0 : index
    %10 = vector.load %arg5[%c0_9, %c0_10] : memref<24x32xf32, #tpu.memory_space<vmem>>, vector<24x32xf32>
    %cst_11 = arith.constant dense<0.000000e+00> : vector<8x32xf32>
    %11 = tpu.matmul %0, %10, %cst_11 {dimension_numbers = #tpu.dot_dimension_numbers<[1], [0], [0], [1], [0, 0, 1, 1], [], []>} : vector<8x24xf32>, vector<24x32xf32>, vector<8x32xf32> -> vector<8x32xf32>
    %12 = arith.addf %9, %11 : vector<8x32xf32>
    %c0_12 = arith.constant 0 : index
    %c0_13 = arith.constant 0 : index
    %13 = vector.load %arg6[%c0_12, %c0_13] : memref<1x32xf32, #tpu.memory_space<vmem>>, vector<1x32xf32>
    %14 = vector.broadcast %13 : vector<1x32xf32> to vector<8x32xf32>
    %15 = arith.addf %12, %14 : vector<8x32xf32>
    %cst_14 = arith.constant 0.000000e+00 : f32
    %16 = vector.broadcast %cst_14 : f32 to vector<8x32xf32>
    %17 = arith.maximumf %15, %16 : vector<8x32xf32>
    %c0_15 = arith.constant 0 : index
    %c0_16 = arith.constant 0 : index
    %18 = vector.load %arg7[%c0_15, %c0_16] : memref<32x5xf32, #tpu.memory_space<vmem>>, vector<32x5xf32>
    %cst_17 = arith.constant dense<0.000000e+00> : vector<8x5xf32>
    %19 = tpu.matmul %17, %18, %cst_17 {dimension_numbers = #tpu.dot_dimension_numbers<[1], [0], [0], [1], [0, 0, 1, 1], [], []>} : vector<8x32xf32>, vector<32x5xf32>, vector<8x5xf32> -> vector<8x5xf32>
    %c0_18 = arith.constant 0 : index
    %c0_19 = arith.constant 0 : index
    %20 = vector.load %arg8[%c0_18, %c0_19] : memref<1x5xf32, #tpu.memory_space<vmem>>, vector<1x5xf32>
    %21 = vector.broadcast %20 : vector<1x5xf32> to vector<8x5xf32>
    %22 = arith.addf %19, %21 : vector<8x5xf32>
    %c0_20 = arith.constant 0 : index
    %c0_21 = arith.constant 0 : index
    %23 = vector.load %arg9[%c0_20, %c0_21] : memref<8x37xf32, #tpu.memory_space<vmem>>, vector<8x32xf32>
    tpu.vector_store %arg9[%c0_20, %c0_21], %7 {strides = array<i32>} : memref<8x37xf32, #tpu.memory_space<vmem>>, vector<8x32xf32>,
    %c0_22 = arith.constant 0 : index
    %c32 = arith.constant 32 : index
    %24 = vector.load %arg9[%c0_22, %c32] : memref<8x37xf32, #tpu.memory_space<vmem>>, vector<8x5xf32>
    tpu.vector_store %arg9[%c0_22, %c32], %22 {strides = array<i32>} : memref<8x37xf32, #tpu.memory_space<vmem>>, vector<8x5xf32>,
    return
  }
  func.func @transform_0(%arg0: i32) -> (i32, i32) {
    %c0_i32 = arith.constant 0 : i32
    %c0_i32_0 = arith.constant 0 : i32
    return %arg0, %c0_i32 : i32, i32
  }
  func.func @transform_1(%arg0: i32) -> (i32, i32) {
    %c0_i32 = arith.constant 0 : i32
    %c0_i32_0 = arith.constant 0 : i32
    %c0_i32_1 = arith.constant 0 : i32
    return %c0_i32, %c0_i32_0 : i32, i32
  }
  func.func @transform_2(%arg0: i32) -> (i32, i32) {
    %c0_i32 = arith.constant 0 : i32
    %c0_i32_0 = arith.constant 0 : i32
    %c0_i32_1 = arith.constant 0 : i32
    return %c0_i32, %c0_i32_0 : i32, i32
  }
  func.func @transform_3(%arg0: i32) -> (i32, i32) {
    %c0_i32 = arith.constant 0 : i32
    %c0_i32_0 = arith.constant 0 : i32
    %c0_i32_1 = arith.constant 0 : i32
    return %c0_i32, %c0_i32_0 : i32, i32
  }
  func.func @transform_4(%arg0: i32) -> (i32, i32) {
    %c0_i32 = arith.constant 0 : i32
    %c0_i32_0 = arith.constant 0 : i32
    %c0_i32_1 = arith.constant 0 : i32
    return %c0_i32, %c0_i32_0 : i32, i32
  }
  func.func @transform_5(%arg0: i32) -> (i32, i32) {
    %c0_i32 = arith.constant 0 : i32
    %c0_i32_0 = arith.constant 0 : i32
    %c0_i32_1 = arith.constant 0 : i32
    return %c0_i32, %c0_i32_0 : i32, i32
  }
  func.func @transform_6(%arg0: i32) -> (i32, i32) {
    %c0_i32 = arith.constant 0 : i32
    %c0_i32_0 = arith.constant 0 : i32
    %c0_i32_1 = arith.constant 0 : i32
    return %c0_i32, %c0_i32_0 : i32, i32
  }
  func.func @transform_7(%arg0: i32) -> (i32, i32) {
    %c0_i32 = arith.constant 0 : i32
    %c0_i32_0 = arith.constant 0 : i32
    %c0_i32_1 = arith.constant 0 : i32
    return %c0_i32, %c0_i32_0 : i32, i32
  }
  func.func @transform_8(%arg0: i32) -> (i32, i32) {
    %c0_i32 = arith.constant 0 : i32
    %c0_i32_0 = arith.constant 0 : i32
    return %arg0, %c0_i32 : i32, i32
  }
}

</mosaic_0001>

<llo_original>
// kernel: tpu_custom_call.1
$region0: #{tpu_custom_call.1}
  #allocation0 [shape = 'u32[]', space=smem, size = 0x4, offset = 0x4, fixed_abs, tag = 'smem constant byte address 0x4 - core index']
  #allocation1 [shape = 'u32[72,128]{1,0:T(1,128)}', space=vmem, size = 0x9000, scoped, tag = 'internal scratch']
  %s0 = inlined_call_operand.vmem [shape: f32[32,24], index: 0, kind: input, shape index: {}]
  %s1 = inlined_call_operand.vmem [shape: f32[24,32], index: 1, kind: input, shape index: {}]
  %s2 = inlined_call_operand.vmem [shape: f32[1,32], index: 2, kind: input, shape index: {}]
  %s3 = inlined_call_operand.vmem [shape: f32[32,32], index: 3, kind: input, shape index: {}]
  %s4 = inlined_call_operand.vmem [shape: f32[24,32], index: 4, kind: input, shape index: {}]
  %s5 = inlined_call_operand.vmem [shape: f32[1,32], index: 5, kind: input, shape index: {}]
  %s6 = inlined_call_operand.vmem [shape: f32[32,5], index: 6, kind: input, shape index: {}]
  %s7 = inlined_call_operand.vmem [shape: f32[1,5], index: 7, kind: input, shape index: {}]
  %s8 = inlined_call_operand.hbm [shape: f32[32,37], index: 8, kind: output, shape index: {}]
  %s9 = sld [smem:[#allocation0]]
  $region65: #{tpu_custom_call.1} parent=0
    _
  %s11 = ssub.s32 1, %s9
  %s12 = scalar_select 0, %s11, %s9
  $region1: #{tpu_custom_call.1} parent=0
    #allocation2 [shape = 'u8[8192]{0}', space=vmem, size = 0x2000, scoped, tag = 'output window, operand 0']
    #allocation3 [shape = 's32[2]{0}', space=sflag, size = 0x8, scoped, tag = 'scoped memory for tpu_custom_call.1']
    %13 = vsyncpa [#allocation3], 0
    %s14 = scalar_lea.sflag [#allocation3], 1
    %15 = vsyncpa %s14, 0
    loop: start=0, step=1, limit=6
    $region2: #{tpu_custom_call.1} parent=1 // loop_pre_header
      _
    $region3: #{tpu_custom_call.1} parent=1 // loop_header
      %s17 = sphi 0, %s21
      %p18 = scmp.ge.s32.totalorder %s17, 6
      %s27 = sphi 0, %s29
      %s30 = sphi 0, %s27
      %s31 = sphi 0, %s30
      %s47 = sphi 0, %s31
      %s51 = sphi 0, %s51
      %s53 = sphi 0, %s51
      %s54 = sphi 0, %s53
      %s68 = sphi 0, %s54
      %s72 = sphi 0, %s72
      %s74 = sphi 0, %s72
      %s75 = sphi 0, %s74
      %s89 = sphi 0, %s75
      %s93 = sphi 0, %s93
      %s95 = sphi 0, %s93
      %s96 = sphi 0, %s95
      %s110 = sphi 0, %s96
      %s114 = sphi 0, %s114
      %s116 = sphi 0, %s114
      %s117 = sphi 0, %s116
      %s131 = sphi 0, %s117
      %s135 = sphi 0, %s135
      %s137 = sphi 0, %s135
      %s138 = sphi 0, %s137
      %s152 = sphi 0, %s138
      %s156 = sphi 0, %s156
      %s158 = sphi 0, %s156
      %s159 = sphi 0, %s158
      %s173 = sphi 0, %s159
      %s177 = sphi 0, %s177
      %s179 = sphi 0, %s177
      %s180 = sphi 0, %s179
      %s194 = sphi 0, %s180
      %s200 = sphi 0, %s202
      %s203 = sphi 0, %s200
      %s204 = sphi 0, %s203
      %s220 = sphi 0, %s204
    $region4: #{tpu_custom_call.1} parent=1 // loop_header_branch
      %20 = sbr.rel (%p18) target = $region8
    $region5: #{tpu_custom_call.1} parent=1 // loop_body
      %s22 = ssub.s32 %s17, 1
      %s23 = ssub.s32 %s17, 2
      %s24 = sadd.s32 %s17, 1
      %s25 = ssub.s32 %s17, %s24
      %p26 = scmp.eq.s32.totalorder %s25, 0
      %s28 = sadd.s32 %s27, 1
      %s29 = scalar_select %p26, %s27, %s28
      %p32 = pneg %p26
      %p33 = scmp.eq.s32.totalorder %s17, 3
      %p34 = por %p32, %p33
      %p35 = scmp.ne.s32.totalorder %s27, %s30
      %p36 = scmp.eq.s32.totalorder %s17, 0
      %p37 = por %p35, %p36
      %p38 = scmp.ne.s32.totalorder %s27, %s30
      %p39 = scmp.eq.s32.totalorder %s22, 3
      %p40 = por %p38, %p39
      %p41 = scmp.ne.s32.totalorder %s30, %s31
      %p42 = scmp.eq.s32.totalorder %s22, 0
      %p43 = por %p41, %p42
      %p44 = scmp.ne.s32.totalorder %s30, %s31
      %p45 = scmp.eq.s32.totalorder %s23, 3
      %p46 = por %p44, %p45
      %p48 = scmp.ne.s32.totalorder %s31, %s47
      %p49 = scmp.eq.s32.totalorder %s23, 0
      %p50 = por %p48, %p49
      %s52 = sadd.s32 %s51, 1
      %p55 = scmp.eq.s32.totalorder %s17, 3
      %p56 = scmp.ne.s32.totalorder %s51, %s53
      %p57 = scmp.eq.s32.totalorder %s17, 0
      %p58 = por %p56, %p57
      %p59 = scmp.ne.s32.totalorder %s51, %s53
      %p60 = scmp.eq.s32.totalorder %s22, 3
      %p61 = por %p59, %p60
      %p62 = scmp.ne.s32.totalorder %s53, %s54
      %p63 = scmp.eq.s32.totalorder %s22, 0
      %p64 = por %p62, %p63
      %p65 = scmp.ne.s32.totalorder %s53, %s54
      %p66 = scmp.eq.s32.totalorder %s23, 3
      %p67 = por %p65, %p66
      %p69 = scmp.ne.s32.totalorder %s54, %s68
      %p70 = scmp.eq.s32.totalorder %s23, 0
      %p71 = por %p69, %p70
      %s73 = sadd.s32 %s72, 1
      %p76 = scmp.eq.s32.totalorder %s17, 3
      %p77 = scmp.ne.s32.totalorder %s72, %s74
      %p78 = scmp.eq.s32.totalorder %s17, 0
      %p79 = por %p77, %p78
      %p80 = scmp.ne.s32.totalorder %s72, %s74
      %p81 = scmp.eq.s32.totalorder %s22, 3
      %p82 = por %p80, %p81
      %p83 = scmp.ne.s32.totalorder %s74, %s75
      %p84 = scmp.eq.s32.totalorder %s22, 0
      %p85 = por %p83, %p84
      %p86 = scmp.ne.s32.totalorder %s74, %s75
      %p87 = scmp.eq.s32.totalorder %s23, 3
      %p88 = por %p86, %p87
      %p90 = scmp.ne.s32.totalorder %s75, %s89
      %p91 = scmp.eq.s32.totalorder %s23, 0
      %p92 = por %p90, %p91
      %s94 = sadd.s32 %s93, 1
      %p97 = scmp.eq.s32.totalorder %s17, 3
      %p98 = scmp.ne.s32.totalorder %s93, %s95
      %p99 = scmp.eq.s32.totalorder %s17, 0
      %p100 = por %p98, %p99
      %p101 = scmp.ne.s32.totalorder %s93, %s95
      %p102 = scmp.eq.s32.totalorder %s22, 3
      %p103 = por %p101, %p102
      %p104 = scmp.ne.s32.totalorder %s95, %s96
      %p105 = scmp.eq.s32.totalorder %s22, 0
      %p106 = por %p104, %p105
      %p107 = scmp.ne.s32.totalorder %s95, %s96
      %p108 = scmp.eq.s32.totalorder %s23, 3
      %p109 = por %p107, %p108
      %p111 = scmp.ne.s32.totalorder %s96, %s110
      %p112 = scmp.eq.s32.totalorder %s23, 0
      %p113 = por %p111, %p112
      %s115 = sadd.s32 %s114, 1
      %p118 = scmp.eq.s32.totalorder %s17, 3
      %p119 = scmp.ne.s32.totalorder %s114, %s116
      %p120 = scmp.eq.s32.totalorder %s17, 0
      %p121 = por %p119, %p120
      %p122 = scmp.ne.s32.totalorder %s114, %s116
      %p123 = scmp.eq.s32.totalorder %s22, 3
      %p124 = por %p122, %p123
      %p125 = scmp.ne.s32.totalorder %s116, %s117
      %p126 = scmp.eq.s32.totalorder %s22, 0
      %p127 = por %p125, %p126
      %p128 = scmp.ne.s32.totalorder %s116, %s117
      %p129 = scmp.eq.s32.totalorder %s23, 3
      %p130 = por %p128, %p129
      %p132 = scmp.ne.s32.totalorder %s117, %s131
      %p133 = scmp.eq.s32.totalorder %s23, 0
      %p134 = por %p132, %p133
      %s136 = sadd.s32 %s135, 1
      %p139 = scmp.eq.s32.totalorder %s17, 3
      %p140 = scmp.ne.s32.totalorder %s135, %s137
      %p141 = scmp.eq.s32.totalorder %s17, 0
      %p142 = por %p140, %p141
      %p143 = scmp.ne.s32.totalorder %s135, %s137
      %p144 = scmp.eq.s32.totalorder %s22, 3
      %p145 = por %p143, %p144
      %p146 = scmp.ne.s32.totalorder %s137, %s138
      %p147 = scmp.eq.s32.totalorder %s22, 0
      %p148 = por %p146, %p147
      %p149 = scmp.ne.s32.totalorder %s137, %s138
      %p150 = scmp.eq.s32.totalorder %s23, 3
      %p151 = por %p149, %p150
      %p153 = scmp.ne.s32.totalorder %s138, %s152
      %p154 = scmp.eq.s32.totalorder %s23, 0
      %p155 = por %p153, %p154
      %s157 = sadd.s32 %s156, 1
      %p160 = scmp.eq.s32.totalorder %s17, 3
      %p161 = scmp.ne.s32.totalorder %s156, %s158
      %p162 = scmp.eq.s32.totalorder %s17, 0
      %p163 = por %p161, %p162
      %p164 = scmp.ne.s32.totalorder %s156, %s158
      %p165 = scmp.eq.s32.totalorder %s22, 3
      %p166 = por %p164, %p165
      %p167 = scmp.ne.s32.totalorder %s158, %s159
      %p168 = scmp.eq.s32.totalorder %s22, 0
      %p169 = por %p167, %p168
      %p170 = scmp.ne.s32.totalorder %s158, %s159
      %p171 = scmp.eq.s32.totalorder %s23, 3
      %p172 = por %p170, %p171
      %p174 = scmp.ne.s32.totalorder %s159, %s173
      %p175 = scmp.eq.s32.totalorder %s23, 0
      %p176 = por %p174, %p175
      %s178 = sadd.s32 %s177, 1
      %p181 = scmp.eq.s32.totalorder %s17, 3
      %p182 = scmp.ne.s32.totalorder %s177, %s179
      %p183 = scmp.eq.s32.totalorder %s17, 0
      %p184 = por %p182, %p183
      %p185 = scmp.ne.s32.totalorder %s177, %s179
      %p186 = scmp.eq.s32.totalorder %s22, 3
      %p187 = por %p185, %p186
      %p188 = scmp.ne.s32.totalorder %s179, %s180
      %p189 = scmp.eq.s32.totalorder %s22, 0
      %p190 = por %p188, %p189
      %p191 = scmp.ne.s32.totalorder %s179, %s180
      %p192 = scmp.eq.s32.totalorder %s23, 3
      %p193 = por %p191, %p192
      %p195 = scmp.ne.s32.totalorder %s180, %s194
      %p196 = scmp.eq.s32.totalorder %s23, 0
      %p197 = por %p195, %p196
      %s198 = ssub.s32 %s17, %s24
      %p199 = scmp.eq.s32.totalorder %s198, 0
      %s201 = sadd.s32 %s200, 1
      %s202 = scalar_select %p199, %s200, %s201
      %p205 = pneg %p199
      %p206 = scmp.eq.s32.totalorder %s17, 3
      %p207 = por %p205, %p206
      %p208 = scmp.ne.s32.totalorder %s200, %s203
      %p209 = scmp.eq.s32.totalorder %s17, 0
      %p210 = por %p208, %p209
      %p211 = scmp.ne.s32.totalorder %s200, %s203
      %p212 = scmp.eq.s32.totalorder %s22, 3
      %p213 = por %p211, %p212
      %p214 = scmp.ne.s32.totalorder %s203, %s204
      %p215 = scmp.eq.s32.totalorder %s22, 0
      %p216 = por %p214, %p215
      %p217 = scmp.ne.s32.totalorder %s203, %s204
      %p218 = scmp.eq.s32.totalorder %s23, 3
      %p219 = por %p217, %p218
      %p221 = scmp.ne.s32.totalorder %s204, %s220
      %p222 = scmp.eq.s32.totalorder %s23, 0
      %p223 = por %p221, %p222
      %p224 = scmp.le.s32.totalorder 1, %s17
      %p225 = scmp.lt.s32.totalorder %s17, 5
      %p226 = pnand %p224, %p225
      %p227 = pneg %p226
      // Predicated region
      $region9: #{tpu_custom_call.1} parent=5 // pred_check
        _
      $region10: #{tpu_custom_call.1} parent=5 // pred_check_branch
        %229 = sbr.rel (%p226) target = $region12
      $region11: #{tpu_custom_call.1} parent=5 // pred_region
        %s230 = ssub.s32 %s17, 1
        // Predicated region
        $region13: #{tpu_custom_call.1} parent=11 // pred_check
          %p231 = pneg %p64
        $region14: #{tpu_custom_call.1} parent=11 // pred_check_branch
          %233 = sbr.rel (%p231) target = $region16
        $region15: #{tpu_custom_call.1} parent=11 // pred_region
          _
        $region16: #{tpu_custom_call.1} parent=11 // pred_fallthru
          _
        // Predicated region
        $region17: #{tpu_custom_call.1} parent=11 // pred_check
          %p234 = pneg %p85
        $region18: #{tpu_custom_call.1} parent=11 // pred_check_branch
          %236 = sbr.rel (%p234) target = $region20
        $region19: #{tpu_custom_call.1} parent=11 // pred_region
          _
        $region20: #{tpu_custom_call.1} parent=11 // pred_fallthru
          _
        // Predicated region
        $region21: #{tpu_custom_call.1} parent=11 // pred_check
          %p237 = pneg %p106
        $region22: #{tpu_custom_call.1} parent=11 // pred_check_branch
          %239 = sbr.rel (%p237) target = $region24
        $region23: #{tpu_custom_call.1} parent=11 // pred_region
          _
        $region24: #{tpu_custom_call.1} parent=11 // pred_fallthru
          _
        // Predicated region
        $region25: #{tpu_custom_call.1} parent=11 // pred_check
          %p240 = pneg %p127
        $region26: #{tpu_custom_call.1} parent=11 // pred_check_branch
          %242 = sbr.rel (%p240) target = $region28
        $region27: #{tpu_custom_call.1} parent=11 // pred_region
          _
        $region28: #{tpu_custom_call.1} parent=11 // pred_fallthru
          _
        // Predicated region
        $region29: #{tpu_custom_call.1} parent=11 // pred_check
          %p243 = pneg %p148
        $region30: #{tpu_custom_call.1} parent=11 // pred_check_branch
          %245 = sbr.rel (%p243) target = $region32
        $region31: #{tpu_custom_call.1} parent=11 // pred_region
          _
        $region32: #{tpu_custom_call.1} parent=11 // pred_fallthru
          _
        // Predicated region
        $region33: #{tpu_custom_call.1} parent=11 // pred_check
          %p246 = pneg %p169
        $region34: #{tpu_custom_call.1} parent=11 // pred_check_branch
          %248 = sbr.rel (%p246) target = $region36
        $region35: #{tpu_custom_call.1} parent=11 // pred_region
          _
        $region36: #{tpu_custom_call.1} parent=11 // pred_fallthru
          _
        // Predicated region
        $region37: #{tpu_custom_call.1} parent=11 // pred_check
          %p249 = pneg %p190
        $region38: #{tpu_custom_call.1} parent=11 // pred_check_branch
          %251 = sbr.rel (%p249) target = $region40
        $region39: #{tpu_custom_call.1} parent=11 // pred_region
          _
        $region40: #{tpu_custom_call.1} parent=11 // pred_fallthru
          _
      $region12: #{tpu_custom_call.1} parent=5 // pred_fallthru
        _
      %p252 = scmp.lt.s32.totalorder %s17, 4
      // Predicated region
      $region41: #{tpu_custom_call.1} parent=5 // pred_check
        %p253 = pneg %p252
      $region42: #{tpu_custom_call.1} parent=5 // pred_check_branch
        %255 = sbr.rel (%p253) target = $region44
      $region43: #{tpu_custom_call.1} parent=5 // pred_region
        // Predicated region
        $region45: #{tpu_custom_call.1} parent=43 // pred_check
          %p256 = pneg %p37
        $region46: #{tpu_custom_call.1} parent=43 // pred_check_branch
          %258 = sbr.rel (%p256) target = $region48
        $region47: #{tpu_custom_call.1} parent=43 // pred_region
          %p259 = scmp.lt.s32.totalorder %s17, 3
          %s260 = scalar_select %p259, %s17, 3
          %s261 = smul.addr %s260, 8
          %s262 = scalar_lea.vmem %s0, %s261
        $region48: #{tpu_custom_call.1} parent=43 // pred_fallthru
          _
      $region44: #{tpu_custom_call.1} parent=5 // pred_fallthru
        _
      %p263 = scmp.le.s32.totalorder 1, %s17
      %p264 = scmp.lt.s32.totalorder %s17, 5
      %p265 = pnand %p263, %p264
      %p266 = pneg %p265
      // Predicated region
      $region49: #{tpu_custom_call.1} parent=5 // pred_check
        _
      $region50: #{tpu_custom_call.1} parent=5 // pred_check_branch
        %268 = sbr.rel (%p265) target = $region52
      $region51: #{tpu_custom_call.1} parent=5 // pred_region
        %s269 = ssub.s32 %s17, 1
        %p270 = scmp.lt.s32.totalorder %s22, 3
        %s271 = scalar_select %p270, %s22, 3
        %s272 = smul.addr %s271, 8
        %s273 = scalar_lea.vmem %s0, %s272
        %p274 = pneg %p43
        %p275 = pneg %p40
        %p276 = pneg %p64
        %p277 = pneg %p61
        %p278 = pneg %p85
        %p279 = pneg %p82
        %p280 = pneg %p106
        %p281 = pneg %p103
        %p282 = pneg %p127
        %p283 = pneg %p124
        %p284 = pneg %p148
        %p285 = pneg %p145
        %p286 = pneg %p169
        %p287 = pneg %p166
        %p288 = pneg %p190
        %p289 = pneg %p187
        %p290 = pneg %p216
        %p291 = pneg %p213
        %s292 = sand.u32 %s203, 1
        %s293 = scalar_lea.sflag [#allocation3], %s292
        %s294 = sand.u32 %s203, 1
        %s295 = smul.addr %s294, 8
        %s296 = scalar_lea.vmem [#allocation2], %s295
        %p297 = scmp.lt.s32.totalorder %s22, 3
        %s298 = scalar_select %p297, %s22, 3
        %s299 = smul.addr %s298, 8
        %s300 = scalar_lea.vmem %s0, %s299
        %v301 = vld [vmem:[%s300] sm:$0xff]
        %v302 = vld [vmem:[%s1] sm:$0xff]
        %v303 = vld [vmem:[%s1 + $0x8] sm:$0xff]
        %v304 = vld [vmem:[%s1 + $0x10] sm:$0xff]
        %v305 = vld [vmem:[%s2] sm:$0x1]
        %v307 = vperm.slane %v305, 0
        %vm309 = vcmask 195584
        %v311 = vsel %vm309, %v301, 0
        %313 = vmatpush.msra.mxu0 0.0
        %314 = vmatpush.msra.mxu0 0.0
        %315 = vmatpush.msra.mxu0 0.0
        %316 = vmatpush.msra.mxu0 0.0
        %317 = vmatpush.msra.mxu0 0.0
        %318 = vmatpush.msra.mxu0 0.0
        %319 = vmatpush.msra.mxu0 0.0
        %320 = vmatpush.msra.mxu0 0.0
        %321 = vmatpush.msra.mxu0 0.0
        %322 = vmatpush.msra.mxu0 0.0
        %323 = vmatpush.msra.mxu0 0.0
        %324 = vmatpush.msra.mxu0 0.0
        %325 = vmatpush.msra.mxu0 0.0
        %326 = vmatpush.msra.mxu0 %v304
        %327 = vmatpush.msra.mxu0 %v303
        %328 = vmatpush.msra.mxu0 %v302
        %329 = vmatmul.f32.gmra.mxu0 %v311
        %v330 = vpop.f32.mrf.mxu0
        %v331 = vadd.f32 %v307, %v330
        %332 = vdwg.mxu0
        %v333 = vmax.f32 %v331, 0.0
        %v334 = vld [vmem:[%s3] sm:$0xff]
        %v335 = vld [vmem:[%s3 + $0x8] sm:$0xff]
        %v336 = vld [vmem:[%s3 + $0x10] sm:$0xff]
        %v337 = vld [vmem:[%s3 + $0x18] sm:$0xff]
        %v338 = vld [vmem:[%s4] sm:$0xff]
        %v339 = vld [vmem:[%s4 + $0x8] sm:$0xff]
        %v340 = vld [vmem:[%s4 + $0x10] sm:$0xff]
        %341 = vmatpush.msra.mxu0 0.0
        %342 = vmatpush.msra.mxu0 0.0
        %343 = vmatpush.msra.mxu0 0.0
        %344 = vmatpush.msra.mxu0 0.0
        %345 = vmatpush.msra.mxu0 0.0
        %346 = vmatpush.msra.mxu0 0.0
        %347 = vmatpush.msra.mxu0 0.0
        %348 = vmatpush.msra.mxu0 0.0
        %349 = vmatpush.msra.mxu0 0.0
        %350 = vmatpush.msra.mxu0 0.0
        %351 = vmatpush.msra.mxu0 0.0
        %352 = vmatpush.msra.mxu0 0.0
        %353 = vmatpush.msra.mxu0 0.0
        %354 = vmatpush.msra.mxu0 %v340
        %355 = vmatpush.msra.mxu0 %v339
        %356 = vmatpush.msra.mxu0 %v338
        %357 = vmatmul.f32.gmra.mxu0 %v311
        %v358 = vpop.f32.mrf.mxu0
        %v359 = vadd.f32 0.0, %v358
        %360 = vdwg.mxu0
        %vm361 = vcmask 261120
        %v363 = vsel %vm361, %v333, 0
        %365 = vmatpush.msra.mxu0 0.0
        %366 = vmatpush.msra.mxu0 0.0
        %367 = vmatpush.msra.mxu0 0.0
        %368 = vmatpush.msra.mxu0 0.0
        %369 = vmatpush.msra.mxu0 0.0
        %370 = vmatpush.msra.mxu0 0.0
        %371 = vmatpush.msra.mxu0 0.0
        %372 = vmatpush.msra.mxu0 0.0
        %373 = vmatpush.msra.mxu0 0.0
        %374 = vmatpush.msra.mxu0 0.0
        %375 = vmatpush.msra.mxu0 0.0
        %376 = vmatpush.msra.mxu0 0.0
        %377 = vmatpush.msra.mxu0 %v337
        %378 = vmatpush.msra.mxu0 %v336
        %379 = vmatpush.msra.mxu0 %v335
        %380 = vmatpush.msra.mxu0 %v334
        %381 = vmatmul.f32.gmra.mxu0 %v363
        %v382 = vpop.f32.mrf.mxu0
        %v383 = vadd.f32 %v359, %v382
        %384 = vdwg.mxu0
        %v385 = vld [vmem:[%s5] sm:$0x1]
        %v387 = vperm.slane %v385, 0
        %v389 = vadd.f32 %v383, %v387
        %v390 = vmax.f32 %v389, 0.0
        %v391 = vld [vmem:[%s6] sm:$0xff]
        %v392 = vld [vmem:[%s6 + $0x8] sm:$0xff]
        %v393 = vld [vmem:[%s6 + $0x10] sm:$0xff]
        %v394 = vld [vmem:[%s6 + $0x18] sm:$0xff]
        %v395 = vld [vmem:[%s7] sm:$0x1]
        %v397 = vperm.slane %v395, 0
        %v400 = vsel %vm361, %v390, 0
        %402 = vmatpush.msra.mxu0 0.0
        %403 = vmatpush.msra.mxu0 0.0
        %404 = vmatpush.msra.mxu0 0.0
        %405 = vmatpush.msra.mxu0 0.0
        %406 = vmatpush.msra.mxu0 0.0
        %407 = vmatpush.msra.mxu0 0.0
        %408 = vmatpush.msra.mxu0 0.0
        %409 = vmatpush.msra.mxu0 0.0
        %410 = vmatpush.msra.mxu0 0.0
        %411 = vmatpush.msra.mxu0 0.0
        %412 = vmatpush.msra.mxu0 0.0
        %413 = vmatpush.msra.mxu0 0.0
        %414 = vmatpush.msra.mxu0 %v394
        %415 = vmatpush.msra.mxu0 %v393
        %416 = vmatpush.msra.mxu0 %v392
        %417 = vmatpush.msra.mxu0 %v391
        %418 = vmatmul.f32.gmra.mxu0 %v400
        %v419 = vpop.f32.mrf.mxu0
        %v420 = vadd.f32 %v397, %v419
        %421 = vdwg.mxu0
        %422 = vst.msk [vmem:[%s296] sm:$0xff] %vm361, %v333
        %424 = vrot.lane.b32.xlu0 %v420, 32
        %v425 = vpop.permute.xlu0 %424
        %vm427 = vcmask 302336
        %428 = vst.msk [vmem:[%s296] sm:$0xff] %vm427, %v425
        %s429 = sand.u32 %s203, 1
        %s430 = scalar_lea.sflag [#allocation3], %s429
        %s431 = sand.u32 %s203, 1
        %s432 = smul.addr %s431, 8
        %s433 = scalar_lea.vmem [#allocation2], %s432
        // Predicated region
        $region53: #{tpu_custom_call.1} parent=51 // pred_check
          %p434 = pneg %p213
        $region54: #{tpu_custom_call.1} parent=51 // pred_check_branch
          %436 = sbr.rel (%p434) target = $region56
        $region55: #{tpu_custom_call.1} parent=51 // pred_region
          %438 = vsyncadd %s430, 0
          %s439 = smul.addr %s22, 8
          %s440 = scalar_lea.hbm %s8, %s439
          %s442 = sshll.u32 %s433, 4
          %s443 = int_to_ptr.vmem [resolvable:$true] %s442
          %s444 = sshll.u32 %s440, 4
          %s445 = int_to_ptr.hbm [resolvable:$true] %s444
          %447 = dma.vmem_to_hbm [thread:$0]  %s443, 128, %s445, %s430
        $region56: #{tpu_custom_call.1} parent=51 // pred_fallthru
          _
      $region52: #{tpu_custom_call.1} parent=5 // pred_fallthru
        _
      %p448 = scmp.le.s32.totalorder 2, %s17
      // Predicated region
      $region57: #{tpu_custom_call.1} parent=5 // pred_check
        %p449 = pneg %p448
      $region58: #{tpu_custom_call.1} parent=5 // pred_check_branch
        %451 = sbr.rel (%p449) target = $region60
      $region59: #{tpu_custom_call.1} parent=5 // pred_region
        %s452 = ssub.s32 %s17, 2
        // Predicated region
        $region61: #{tpu_custom_call.1} parent=59 // pred_check
          %p453 = pneg %p219
        $region62: #{tpu_custom_call.1} parent=59 // pred_check_branch
          %455 = sbr.rel (%p453) target = $region64
        $region63: #{tpu_custom_call.1} parent=59 // pred_region
          %s456 = sand.u32 %s204, 1
          %s457 = scalar_lea.sflag [#allocation3], %s456
          %s458 = sand.u32 %s204, 1
          %s459 = smul.addr %s458, 8
          %s460 = scalar_lea.vmem [#allocation2], %s459
          %462 = dma.done %s457, 128
        $region64: #{tpu_custom_call.1} parent=59 // pred_fallthru
          _
      $region60: #{tpu_custom_call.1} parent=5 // pred_fallthru
        _
    $region6: #{tpu_custom_call.1} parent=1 // loop_footer
      %s21 = sadd.s32 1, %s17
    $region7: #{tpu_custom_call.1} parent=1 // loop_footer_branch
      %16 = sbr.rel target = $region3
    $region8: #{tpu_custom_call.1} parent=1 // loop_exit
      _
    %463 = vsyncpa [#allocation3], 1
    %s464 = scalar_lea.sflag [#allocation3], 1
    %465 = vsyncpa %s464, 1

</llo_original>
